<compile_context>
chip_gen: v7x
topology: tpu7x:2x2x1
jax: 0.10.0
libtpu: 0.0.40
codegen_flags: <defaults>
</compile_context>

<pallas_src>
import functools

import jax
import jax.numpy as jnp
from jax import lax
from jax.experimental import pallas as pl
from jax.experimental.pallas import tpu as pltpu


def _decoder_kernel(ids_ref, table_ref, w_ref, out_ref, *, context_size):
    """Fused embedding lookup + depthwise causal conv + relu over N*U rows.

    ids_ref:   (R, 3) int32  [:,0]=decoder id, [:,1]=switch id + V_dec,
                             [:,2]=position within the utterance
    table_ref: (V_total, Dp) f32 stacked feature-placed embedding table
    w_ref:     (C, Dp)       f32 depthwise conv weights, w[k, d]
    out_ref:   (R, Dp)       f32
    """
    R = ids_ref.shape[0]
    V = table_ref.shape[0]

    ids = ids_ref[...]                 # (R, 3) int32
    dec_id = ids[:, 0:1]               # (R, 1)
    swit_id = ids[:, 1:2]              # (R, 1)  already offset by V_dec
    u_pos = ids[:, 2:3]                # (R, 1)  position inside utterance

    # Fused lookup: one multi-hot (two ones per row, disjoint id ranges) matmul.
    iota_v = lax.broadcasted_iota(jnp.int32, (R, V), 1)
    multi_hot = ((iota_v == dec_id) | (iota_v == swit_id)).astype(jnp.float32)
    emb = jnp.dot(multi_hot, table_ref[...],
                  preferred_element_type=jnp.float32)     # (R, Dp)

    if context_size > 1:
        # Depthwise causal conv along rows:
        #   out[r] = sum_j w[C-1-j] * emb[r - j]   (emb[r-j] := 0 outside the
        #   same utterance / before its start)
        acc = emb * w_ref[context_size - 1:context_size, :]   # delay j = 0
        for j in range(1, context_size):
            shifted = pltpu.roll(emb, j, 0)                   # shifted[r] = emb[r-j]
            tap_w = w_ref[context_size - 1 - j:context_size - j, :]
            acc = acc + jnp.where(u_pos >= j, shifted * tap_w, 0.0)
        emb = acc

    out_ref[...] = jnp.maximum(emb, 0.0)


def decoder_forward(y, emb_dec_w, emb_swit_w, conv_w_torch,
                    *, context_size, need_pad=True):
    """Pallas Decoder forward.

    y:            (N, U, 2) int
    emb_dec_w:    (V_dec, D_dec) f32 decoder embedding table (blank row zero)
    emb_swit_w:   (V_swit, D_swit) f32 switch embedding table (blank row zero)
    conv_w_torch: (D, 1, context_size) f32 depthwise conv weights (torch layout)
    returns       (N, U, D) if need_pad or context_size == 1,
                  else (N, U - context_size + 1, D)
    """
    N, U, _ = y.shape
    V_dec, D_dec = emb_dec_w.shape
    V_swit, D_swit = emb_swit_w.shape
    D = D_dec + D_swit
    V_tot = V_dec + V_swit
    C = context_size

    # Lane-dense feature dim (multiple of 128) for unmasked vector stores.
    LANES = 128
    D_pad = ((D + LANES - 1) // LANES) * LANES

    # Stacked, feature-placed table: rows [0, V_dec) hold the decoder table in
    # cols [0, D_dec); rows [V_dec, V_tot) hold the switch table in
    # cols [D_dec, D).  concat(dec_emb, swit_emb) == multi_hot @ table.
    table = jnp.zeros((V_tot, D_pad), jnp.float32)
    table = table.at[:V_dec, :D_dec].set(emb_dec_w.astype(jnp.float32))
    table = table.at[V_dec:, D_dec:D].set(emb_swit_w.astype(jnp.float32))

    # Depthwise conv weights -> (C, D_pad): w_kd[k, d] = torch.weight[d, 0, k].
    C_w = max(C, 1)
    w_kd = jnp.zeros((C_w, D_pad), jnp.float32)
    if C > 1:
        w_kd = w_kd.at[:, :D].set(
            jnp.transpose(conv_w_torch[:, 0, :], (1, 0)).astype(jnp.float32))

    # Flatten (N, U) -> rows; merge ids (switch offset by V_dec) and the
    # within-utterance position into a single int32 block.  Pad the row count
    # to a multiple of 8 (sublane) with blank rows (zero embedding).
    NU = N * U
    NU_pad = ((NU + 7) // 8) * 8
    dec_ids = y[:, :, 0].astype(jnp.int32).reshape(NU)
    swit_ids = y[:, :, 1].astype(jnp.int32).reshape(NU) + V_dec
    u_pos = jnp.broadcast_to(jnp.arange(U, dtype=jnp.int32)[None, :],
                             (N, U)).reshape(NU)
    ids = jnp.stack([dec_ids, swit_ids, u_pos], axis=-1)       # (NU, 3)
    if NU_pad != NU:
        pad_rows = jnp.zeros((NU_pad - NU, 3), jnp.int32).at[:, 1].set(V_dec)
        ids = jnp.concatenate([ids, pad_rows], axis=0)

    kernel = functools.partial(_decoder_kernel, context_size=C)

    out = pl.pallas_call(
        kernel,
        out_shape=jax.ShapeDtypeStruct((NU_pad, D_pad), jnp.float32),
        grid=(1,),
        in_specs=[
            pl.BlockSpec((NU_pad, 3), lambda i: (0, 0)),        # merged ids
            pl.BlockSpec((V_tot, D_pad), lambda i: (0, 0)),     # stacked table
            pl.BlockSpec((C_w, D_pad), lambda i: (0, 0)),       # conv weights
        ],
        out_specs=pl.BlockSpec((NU_pad, D_pad), lambda i: (0, 0)),
        compiler_params=pltpu.CompilerParams(
            dimension_semantics=("arbitrary",)),
    )(ids, table, w_kd)

    out = out[:NU, :D].reshape(N, U, D)
    if C > 1 and not need_pad:
        # The no-pad (streaming) output is exactly the tail of the padded one:
        # out_nopad[u] = out_pad[u + C - 1].
        out = out[:, C - 1:, :]
    return out


def reference_forward(y, emb_dec_w, emb_swit_w, conv_w_torch,
                      *, context_size, need_pad=True):
    """Plain-JAX reference mirroring the PyTorch forward (for validation)."""
    N, U, _ = y.shape
    y_dec = emb_dec_w[y[:, :, 0]]    # (N, U, D_dec)
    y_swit = emb_swit_w[y[:, :, 1]]  # (N, U, D_swit)
    emb = jnp.concatenate([y_dec, y_swit], axis=2)  # (N, U, D)
    if context_size > 1:
        x = jnp.transpose(emb, (0, 2, 1))  # (N, D, U)
        if need_pad:
            x = jnp.pad(x, ((0, 0), (0, 0), (context_size - 1, 0)))
        u_out = x.shape[-1] - (context_size - 1)
        out = jnp.zeros((N, x.shape[1], u_out), jnp.float32)
        for k in range(context_size):
            out = out + x[:, :, k:k + u_out] * conv_w_torch[:, 0, k][None, :, None]
        emb = jnp.transpose(out, (0, 2, 1))
    return jax.nn.relu(emb)


if __name__ == "__main__":
    # Module hyper-parameters (small, consistent with the forward pass).
    vocab_size = 16
    switch_size = 6
    switch_dim = 8
    decoder_dim = 32
    blank_id = 0
    context_size = 2

    N, U = 2, 8
    D_dec = decoder_dim - switch_dim

    key = jax.random.PRNGKey(0)
    k1, k2, k3, k4, k5 = jax.random.split(key, 5)

    # ScaledEmbedding weights (padding_idx row zeroed), scalar scale folded in.
    dec_scale = 0.5
    swit_scale = 1.5
    emb_dec_w = jax.random.normal(k1, (vocab_size, D_dec), jnp.float32) * dec_scale
    emb_dec_w = emb_dec_w.at[blank_id].set(0.0)
    emb_swit_w = jax.random.normal(k2, (switch_size, switch_dim),
                                   jnp.float32) * swit_scale
    emb_swit_w = emb_swit_w.at[blank_id].set(0.0)

    # ScaledConv1d depthwise weights: torch shape (decoder_dim, 1, context_size),
    # scalar weight_scale folded in.
    conv_scale = 0.8
    conv_w_torch = jax.random.normal(
        k3, (decoder_dim, 1, context_size), jnp.float32) * conv_scale

    # Token ids: (N, U, 2) — first channel in [0, vocab_size), second in
    # [0, switch_size).
    y_dec_ids = jax.random.randint(k4, (N, U), 0, vocab_size, dtype=jnp.int32)
    y_swit_ids = jax.random.randint(k5, (N, U), 0, switch_size, dtype=jnp.int32)
    y = jnp.stack([y_dec_ids, y_swit_ids], axis=-1)  # (N, U, 2)

    # Training path (need_pad=True).
    out = decoder_forward(y, emb_dec_w, emb_swit_w, conv_w_torch,
                          context_size=context_size, need_pad=True)
    out = jax.block_until_ready(out)
    ref = reference_forward(y, emb_dec_w, emb_swit_w, conv_w_torch,
                            context_size=context_size, need_pad=True)
    assert out.shape == (N, U, decoder_dim), out.shape
    assert jnp.allclose(out, ref, rtol=1e-5, atol=1e-5), \
        f"max abs err = {jnp.max(jnp.abs(out - ref))}"

    # Streaming / inference path (need_pad=False, U == context_size).
    y_s = y[:, :context_size, :]
    out_s = decoder_forward(y_s, emb_dec_w, emb_swit_w, conv_w_torch,
                            context_size=context_size, need_pad=False)
    out_s = jax.block_until_ready(out_s)
    ref_s = reference_forward(y_s, emb_dec_w, emb_swit_w, conv_w_torch,
                              context_size=context_size, need_pad=False)
    assert out_s.shape == (N, 1, decoder_dim), out_s.shape
    assert jnp.allclose(out_s, ref_s, rtol=1e-5, atol=1e-5), \
        f"max abs err (need_pad=False) = {jnp.max(jnp.abs(out_s - ref_s))}"

    print("KERNEL_OK")
</pallas_src>

<mosaic_0001>
module attributes {stable_mosaic.version = 11 : i64} {
  func.func @_decoder_kernel(%arg0: i32, %arg1: memref<16x3xi32, #tpu.memory_space<vmem>>, %arg2: memref<22x128xf32, #tpu.memory_space<vmem>>, %arg3: memref<2x128xf32, #tpu.memory_space<vmem>>, %arg4: memref<16x128xf32, #tpu.memory_space<vmem>>) attributes {dimension_semantics = [#tpu.dimension_semantics<arbitrary>], iteration_bounds = array<i64: 1>, scalar_prefetch = 0 : i64, scratch_operands = 0 : i64, tpu.core_type = #tpu.core_type<tc>, window_params = [{pipeline_mode = #tpu.pipeline_mode<synchronous>, transform_indices = @transform_0, window_bounds = array<i64: 16, 3>}, {pipeline_mode = #tpu.pipeline_mode<synchronous>, transform_indices = @transform_1, window_bounds = array<i64: 22, 128>}, {pipeline_mode = #tpu.pipeline_mode<synchronous>, transform_indices = @transform_2, window_bounds = array<i64: 2, 128>}, {pipeline_mode = #tpu.pipeline_mode<synchronous>, transform_indices = @transform_3, window_bounds = array<i64: 16, 128>}]} {
    %c0 = arith.constant 0 : index
    %c0_0 = arith.constant 0 : index
    %0 = vector.load %arg1[%c0, %c0_0] : memref<16x3xi32, #tpu.memory_space<vmem>>, vector<16x3xi32>
    %1 = vector.extract_strided_slice %0 {offsets = [0, 0], sizes = [16, 1], strides = [1, 1]} : vector<16x3xi32> to vector<16x1xi32>
    %2 = vector.extract_strided_slice %0 {offsets = [0, 1], sizes = [16, 1], strides = [1, 1]} : vector<16x3xi32> to vector<16x1xi32>
    %3 = vector.extract_strided_slice %0 {offsets = [0, 2], sizes = [16, 1], strides = [1, 1]} : vector<16x3xi32> to vector<16x1xi32>
    %4 = tpu.iota {dimensions = array<i32: 1>} : vector<16x22xi32>
    %5 = vector.broadcast %1 : vector<16x1xi32> to vector<16x22xi32>
    %6 = arith.cmpi eq, %4, %5 : vector<16x22xi32>
    %7 = vector.broadcast %2 : vector<16x1xi32> to vector<16x22xi32>
    %8 = arith.cmpi eq, %4, %7 : vector<16x22xi32>
    %9 = arith.ori %6, %8 : vector<16x22xi1>
    %10 = arith.extui %9 : vector<16x22xi1> to vector<16x22xi32>
    %11 = arith.sitofp %10 : vector<16x22xi32> to vector<16x22xf32>
    %c0_1 = arith.constant 0 : index
    %c0_2 = arith.constant 0 : index
    %12 = vector.load %arg2[%c0_1, %c0_2] : memref<22x128xf32, #tpu.memory_space<vmem>>, vector<22x128xf32>
    %cst = arith.constant dense<0.000000e+00> : vector<16x128xf32>
    %13 = tpu.matmul %11, %12, %cst {dimension_numbers = #tpu.dot_dimension_numbers<[1], [0], [0], [1], [0, 0, 1, 1], [], []>} : vector<16x22xf32>, vector<22x128xf32>, vector<16x128xf32> -> vector<16x128xf32>
    %c1 = arith.constant 1 : index
    %c0_3 = arith.constant 0 : index
    %14 = vector.load %arg3[%c1, %c0_3] : memref<2x128xf32, #tpu.memory_space<vmem>>, vector<1x128xf32>
    %15 = vector.broadcast %14 : vector<1x128xf32> to vector<16x128xf32>
    %16 = arith.mulf %13, %15 : vector<16x128xf32>
    %c1_i32 = arith.constant 1 : i32
    %17 = tpu.dynamic_rotate %13 by %c1_i32 dim 0 : vector<16x128xf32>, i32 -> vector<16x128xf32>
    %c0_4 = arith.constant 0 : index
    %c0_5 = arith.constant 0 : index
    %18 = vector.load %arg3[%c0_4, %c0_5] : memref<2x128xf32, #tpu.memory_space<vmem>>, vector<1x128xf32>
    %c1_i32_6 = arith.constant 1 : i32
    %19 = vector.broadcast %c1_i32_6 : i32 to vector<16x1xi32>
    %20 = arith.cmpi sge, %3, %19 : vector<16x1xi32>
    %21 = vector.broadcast %18 : vector<1x128xf32> to vector<16x128xf32>
    %22 = arith.mulf %17, %21 : vector<16x128xf32>
    %cst_7 = arith.constant 0.000000e+00 : f32
    %23 = vector.shape_cast %20 : vector<16x1xi1> to vector<16x1xi1>
    %24 = vector.broadcast %23 : vector<16x1xi1> to vector<16x128xi1>
    %25 = vector.broadcast %cst_7 : f32 to vector<16x128xf32>
    %26 = arith.select %24, %22, %25 : vector<16x128xi1>, vector<16x128xf32>
    %27 = arith.addf %16, %26 : vector<16x128xf32>
    %cst_8 = arith.constant 0.000000e+00 : f32
    %28 = vector.broadcast %cst_8 : f32 to vector<16x128xf32>
    %29 = arith.maximumf %27, %28 : vector<16x128xf32>
    %c0_9 = arith.constant 0 : index
    %c0_10 = arith.constant 0 : index
    %30 = vector.load %arg4[%c0_9, %c0_10] : memref<16x128xf32, #tpu.memory_space<vmem>>, vector<16x128xf32>
    tpu.vector_store %arg4[%c0_9, %c0_10], %29 {strides = array<i32>} : memref<16x128xf32, #tpu.memory_space<vmem>>, vector<16x128xf32>,
    return
  }
  func.func @transform_0(%arg0: i32) -> (i32, i32) {
    %c0_i32 = arith.constant 0 : i32
    %c0_i32_0 = arith.constant 0 : i32
    %c0_i32_1 = arith.constant 0 : i32
    return %c0_i32, %c0_i32_0 : i32, i32
  }
  func.func @transform_1(%arg0: i32) -> (i32, i32) {
    %c0_i32 = arith.constant 0 : i32
    %c0_i32_0 = arith.constant 0 : i32
    %c0_i32_1 = arith.constant 0 : i32
    return %c0_i32, %c0_i32_0 : i32, i32
  }
  func.func @transform_2(%arg0: i32) -> (i32, i32) {
    %c0_i32 = arith.constant 0 : i32
    %c0_i32_0 = arith.constant 0 : i32
    %c0_i32_1 = arith.constant 0 : i32
    return %c0_i32, %c0_i32_0 : i32, i32
  }
  func.func @transform_3(%arg0: i32) -> (i32, i32) {
    %c0_i32 = arith.constant 0 : i32
    %c0_i32_0 = arith.constant 0 : i32
    %c0_i32_1 = arith.constant 0 : i32
    return %c0_i32, %c0_i32_0 : i32, i32
  }
}

</mosaic_0001>

<llo_original>
// kernel: tpu_custom_call.1
$region0: #{tpu_custom_call.1}
  #allocation0 [shape = 'u32[]', space=smem, size = 0x4, offset = 0x4, fixed_abs, tag = 'smem constant byte address 0x4 - core index']
  #allocation1 [shape = 'u32[144,128]{1,0:T(1,128)}', space=vmem, size = 0x12000, scoped, tag = 'internal scratch']
  %s0 = inlined_call_operand.vmem [shape: s32[16,3], index: 0, kind: input, shape index: {}]
  %s1 = inlined_call_operand.hbm [shape: f32[22,128], index: 1, kind: input, shape index: {}]
  %s2 = inlined_call_operand.vmem [shape: f32[2,128], index: 2, kind: input, shape index: {}]
  %s3 = inlined_call_operand.hbm [shape: f32[16,128], index: 3, kind: output, shape index: {}]
  %s4 = sld [smem:[#allocation0]]
  $region26: #{tpu_custom_call.1} parent=0
    _
  %s6 = ssub.s32 1, %s4
  %s7 = scalar_select 0, %s6, %s4
  $region1: #{tpu_custom_call.1} parent=0
    #allocation2 [shape = 'u8[12288]{0}', space=vmem, size = 0x3000, scoped, tag = 'input window, operand 1, single buffered']
    #allocation3 [shape = 's32[1]{0}', space=sflag, size = 0x4, scoped, tag = 'scoped memory for tpu_custom_call.1']
    #allocation4 [shape = 's32[1]{0}', space=sflag, size = 0x4, scoped, tag = 'scoped memory for tpu_custom_call.1']
    #allocation5 [shape = 'u8[8192]{0}', space=vmem, size = 0x2000, scoped, tag = 'output window, operand 0, single buffered']
    %8 = vsyncpa [#allocation3], 0
    %9 = vsyncpa [#allocation4], 0
    // Predicated region
    $region2: #{tpu_custom_call.1} parent=1 // pred_check
      _
    $region3: #{tpu_custom_call.1} parent=1 // pred_check_branch
      %11 = sbr.rel (0) target = $region5
    $region4: #{tpu_custom_call.1} parent=1 // pred_region
      _
    $region5: #{tpu_custom_call.1} parent=1 // pred_fallthru
      _
    // Predicated region
    $region6: #{tpu_custom_call.1} parent=1 // pred_check
      _
    $region7: #{tpu_custom_call.1} parent=1 // pred_check_branch
      %13 = sbr.rel (0) target = $region9
    $region8: #{tpu_custom_call.1} parent=1 // pred_region
      %s15 = ssub.s32 384, 384
      %16 = vsyncadd [#allocation3], %s15
      %s17 = sshll.u32 [#allocation2], 4
      %s18 = int_to_ptr.vmem [resolvable:$true] %s17
      %23 = dma.hbm_to_vmem [thread:$0]  %s1, 384, %s18, [#allocation3], 128, 128, 8
    $region9: #{tpu_custom_call.1} parent=1 // pred_fallthru
      _
    // Predicated region
    $region10: #{tpu_custom_call.1} parent=1 // pred_check
      _
    $region11: #{tpu_custom_call.1} parent=1 // pred_check_branch
      %25 = sbr.rel (0) target = $region13
    $region12: #{tpu_custom_call.1} parent=1 // pred_region
      _
    $region13: #{tpu_custom_call.1} parent=1 // pred_fallthru
      _
    // Predicated region
    $region14: #{tpu_custom_call.1} parent=1 // pred_check
      _
    $region15: #{tpu_custom_call.1} parent=1 // pred_check_branch
      %27 = sbr.rel (0) target = $region17
    $region16: #{tpu_custom_call.1} parent=1 // pred_region
      %28 = dma.done [#allocation3], 384
    $region17: #{tpu_custom_call.1} parent=1 // pred_fallthru
      _
    %v29 = vld [vmem:[%s0] sm:$0xff]
    %v30 = vld [vmem:[%s0 + $0x8] sm:$0xff]
    %v31 = vlaneseq
    %v32 = vand.u32 %v31, 127
    %33 = vset.pattern.permute.xlu0 0
    %34 = vperm.xlu0 %33, %v29
    %v35 = vpop.permute.xlu0 %34
    %36 = vset.pattern.permute.xlu0 0
    %37 = vperm.xlu0 %36, %v30
    %v38 = vpop.permute.xlu0 %37
    %vm39 = vcmp.eq.s32.totalorder %v32, %v35
    %vm40 = vcmp.eq.s32.totalorder %v32, %v38
    %41 = vset.pattern.permute.xlu0 1
    %42 = vperm.xlu0 %41, %v29
    %v43 = vpop.permute.xlu0 %42
    %44 = vset.pattern.permute.xlu0 1
    %45 = vperm.xlu0 %44, %v30
    %v46 = vpop.permute.xlu0 %45
    %vm47 = vcmp.eq.s32.totalorder %v32, %v43
    %vm48 = vcmp.eq.s32.totalorder %v32, %v46
    %vm49 = vmor %vm39, %vm47
    %vm50 = vmor %vm40, %vm48
    %v51 = vsel %vm49, 1, 0
    %v52 = vsel %vm50, 1, 0
    %v53 = vcvt.s32.f32 %v51
    %v54 = vcvt.s32.f32 %v52
    %v55 = vld [vmem:[#allocation2] sm:$0xff]
    %v56 = vld [vmem:[#allocation2 + $0x8] sm:$0xff]
    %v57 = vld [vmem:[#allocation2 + $0x10] sm:$0x3f]
    %vm58 = vcmask 179200
    %v60 = vsel %vm58, %v53, 0
    %v63 = vsel %vm58, %v54, 0
    %vm65 = vcmask 1045504
    %v67 = vsel %vm65, %v57, 0
    %69 = vmatprep.subr.mxu0 0.0
    %70 = vmatpush1.msra.mxu0 %v55
    %71 = vmatprep.subr.mxu0 0.0
    %72 = vmatpush1.msra.mxu0 %v56
    %73 = vmatprep.subr.mxu0 0.0
    %74 = vmatpush1.msra.mxu0 %v67
    %75 = vmatprep.subr.mxu0 0.0
    %76 = vmatpush1.msra.mxu0 0.0
    %77 = vmatprep.subr.mxu0 0.0
    %78 = vmatpush1.msra.mxu0 0.0
    %79 = vmatprep.subr.mxu0 0.0
    %80 = vmatpush1.msra.mxu0 0.0
    %81 = vmatprep.subr.mxu0 0.0
    %82 = vmatpush1.msra.mxu0 0.0
    %83 = vmatprep.subr.mxu0 0.0
    %84 = vmatpush1.msra.mxu0 0.0
    %85 = vmatprep.subr.mxu0 0.0
    %86 = vmatpush1.msra.mxu0 0.0
    %87 = vmatprep.subr.mxu0 0.0
    %88 = vmatpush1.msra.mxu0 0.0
    %89 = vmatprep.subr.mxu0 0.0
    %90 = vmatpush1.msra.mxu0 0.0
    %91 = vmatprep.subr.mxu0 0.0
    %92 = vmatpush1.msra.mxu0 0.0
    %93 = vmatprep.subr.mxu0 0.0
    %94 = vmatpush1.msra.mxu0 0.0
    %95 = vmatprep.subr.mxu0 0.0
    %96 = vmatpush1.msra.mxu0 0.0
    %97 = vmatprep.subr.mxu0 0.0
    %98 = vmatpush1.msra.mxu0 0.0
    %99 = vmatprep.subr.mxu0 0.0
    %100 = vmatpush1.msra.mxu0 0.0
    %101 = vmatprep.subr.mxu0 0.0
    %102 = vmatpush1.msra.mxu0 0.0
    %103 = vmatprep.subr.mxu0 0.0
    %104 = vmatpush1.msra.mxu0 0.0
    %105 = vmatprep.subr.mxu0 0.0
    %106 = vmatpush1.msra.mxu0 0.0
    %107 = vmatprep.subr.mxu0 0.0
    %108 = vmatpush1.msra.mxu0 0.0
    %109 = vmatprep.subr.mxu0 0.0
    %110 = vmatpush1.msra.mxu0 0.0
    %111 = vmatprep.subr.mxu0 0.0
    %112 = vmatpush1.msra.mxu0 0.0
    %113 = vmatprep.subr.mxu0 0.0
    %114 = vmatpush1.msra.mxu0 0.0
    %115 = vmatprep.subr.mxu0 0.0
    %116 = vmatpush1.msra.mxu0 0.0
    %117 = vmatprep.subr.mxu0 0.0
    %118 = vmatpush1.msra.mxu0 0.0
    %119 = vmatprep.subr.mxu0 0.0
    %120 = vmatpush1.msra.mxu0 0.0
    %121 = vmatprep.subr.mxu0 0.0
    %122 = vmatpush1.msra.mxu0 0.0
    %123 = vmatprep.subr.mxu0 0.0
    %124 = vmatpush1.msra.mxu0 0.0
    %125 = vmatprep.subr.mxu0 0.0
    %126 = vmatpush1.msra.mxu0 0.0
    %127 = vmatprep.subr.mxu0 0.0
    %128 = vmatpush1.msra.mxu0 0.0
    %129 = vmatprep.subr.mxu0 0.0
    %130 = vmatpush1.msra.mxu0 0.0
    %131 = vmatprep.subr.mxu0 0.0
    %132 = vmatpush1.msra.mxu0 0.0
    %133 = vmatprep.mubr.f32.mxu0 0.0
    %134 = vmatmul.mubr.f32.gmra.mrb[0].mxu0 %v60
    %v135 = vpop.f32.mrb[0].mxu0
    %v136 = vadd.f32 0.0, %v135
    %v137 = vpop.f32.mrb[0].mxu0
    %138 = vmatprep.mubr.f32.mxu0 0.0
    %139 = vmatmul.mubr.f32.gmra.mrb[0].mxu0 %v63
    %v140 = vpop.f32.mrb[0].mxu0
    %v141 = vadd.f32 0.0, %v140
    %v142 = vpop.f32.mrb[0].mxu0
    %143 = vdwg.mxu0
    %v144 = vld [vmem:[%s2 + $0x1] sm:$0x1]
    %v145 = vlaneseq
    %v146 = vshrl.u32 %v145, 7
    %v147 = vsub.s32 0, %v146
    %v148 = vrot.slane %v144, %v147
    %v149 = vmul.f32 %v136, %v148
    %v150 = vmul.f32 %v141, %v148
    %v151 = vrot.slane %v136, 7
    %v152 = vrot.slane %v141, 7
    %v153 = vlaneseq
    %v154 = vshrl.u32 %v153, 7
    %vm155 = vcmp.lt.s32.totalorder %v154, 1
    %v156 = vsel %vm155, %v151, %v152
    %v157 = vsel %vm155, %v152, %v151
    %v158 = vld [vmem:[%s2] sm:$0x1]
    %vm159 = vcmp.ge.s32.totalorder %v29, 1
    %vm160 = vcmp.ge.s32.totalorder %v30, 1
    %v161 = vlaneseq
    %v162 = vshrl.u32 %v161, 7
    %v163 = vsub.s32 0, %v162
    %v164 = vrot.slane %v158, %v163
    %v165 = vmul.f32 %v157, %v164
    %v166 = vmul.f32 %v156, %v164
    %v167 = vsel %vm159, 1, 0
    %v168 = vsel %vm160, 1, 0
    %169 = vset.pattern.permute.xlu0 2
    %170 = vperm.xlu0 %169, %v167
    %v171 = vpop.permute.xlu0 %170
    %172 = vset.pattern.permute.xlu0 2
    %173 = vperm.xlu0 %172, %v168
    %v174 = vpop.permute.xlu0 %173
    %vm175 = vcmp.eq.s32.totalorder %v171, 1
    %vm176 = vcmp.eq.s32.totalorder %v174, 1
    %v177 = vsel %vm175, %v165, 0.0
    %v178 = vsel %vm176, %v166, 0.0
    %v179 = vadd.f32 %v149, %v177
    %v180 = vadd.f32 %v150, %v178
    %v181 = vmax.f32 %v179, 0.0
    %v182 = vmax.f32 %v180, 0.0
    %183 = vst [vmem:[#allocation5] sm:$0xff] %v181
    %184 = vst [vmem:[#allocation5 + $0x8] sm:$0xff] %v182
    // Predicated region
    $region18: #{tpu_custom_call.1} parent=1 // pred_check
      _
    $region19: #{tpu_custom_call.1} parent=1 // pred_check_branch
      %186 = sbr.rel (0) target = $region21
    $region20: #{tpu_custom_call.1} parent=1 // pred_region
      %s188 = ssub.s32 256, 256
      %189 = vsyncadd [#allocation4], %s188
      %s190 = sshll.u32 [#allocation5], 4
      %s191 = int_to_ptr.vmem [resolvable:$true] %s190
      %196 = dma.vmem_to_hbm [thread:$0]  %s191, 256, %s3, [#allocation4], 128, 128, 8
    $region21: #{tpu_custom_call.1} parent=1 // pred_fallthru
      _
    // Predicated region
    $region22: #{tpu_custom_call.1} parent=1 // pred_check
      _
    $region23: #{tpu_custom_call.1} parent=1 // pred_check_branch
      %198 = sbr.rel (0) target = $region25
    $region24: #{tpu_custom_call.1} parent=1 // pred_region
      %199 = dma.done [#allocation4], 256
    $region25: #{tpu_custom_call.1} parent=1 // pred_fallthru
      _
    %200 = vsyncpa [#allocation3], 1
    %201 = vsyncpa [#allocation4], 1

</llo_original>
